<compile_context>
chip_gen: v7x
topology: tpu7x:2x2x1
jax: 0.10.0
libtpu: 0.0.40
codegen_flags: <defaults>
</compile_context>

<pallas_src>
import numpy as np
import jax
import jax.numpy as jnp
from jax import lax
from jax.experimental import pallas as pl
from jax.experimental.pallas import tpu as pltpu


def _round_up(v, m):
    return ((v + m - 1) // m) * m


# ---------------------------------------------------------------------------
# VMEM bookkeeping / generation-aware tile selection.
# ---------------------------------------------------------------------------
def _vmem_capacity_bytes():
    """Physical per-core VMEM; conservative fallback if the query is unavailable."""
    try:
        return int(pltpu.get_tpu_info().vmem_capacity_bytes)
    except Exception:
        return 64 << 20                    # v7x per-TC VMEM (smallest current gen)


def _pass_a_vmem(tn, k_blk, c_pad, itemsize):
    return (2 * tn * k_blk * itemsize      # V tile, double-buffered
            + 2 * tn * c_pad * itemsize    # X tile, double-buffered
            + 2 * k_blk * c_pad * itemsize # filtered V^T X output block
            + k_blk * 128 * 4              # (k_blk,1) filter column (lane-padded, 1 buf)
            + k_blk * c_pad * 4)           # f32 accumulator scratch


def _pass_b_vmem(tn, k_pad, c_pad, itemsize):
    return (2 * tn * k_pad * itemsize      # V tile, double-buffered
            + k_pad * c_pad * itemsize     # filtered V^T X (grid-constant, 1 buf)
            + 2 * tn * c_pad * 4)          # f32 output tile, double-buffered


def _vmem_limit(working_set, vmem_cap):
    lo = 32 << 20
    hi = max(lo, int(vmem_cap) - (8 << 20))          # never request physical VMEM
    return int(min(max(int(working_set) + (4 << 20), lo), hi))


def _choose_tiles(n_nodes, k, channels, itemsize, vmem_cap):
    """Big node tiles on 128 MiB parts (v5e/v6e), clamped on 64 MiB (v7x)."""
    c_pad = _round_up(channels, 128)
    budget = max(int(vmem_cap) - (12 << 20), 16 << 20)

    tn = 2048 if vmem_cap >= (100 << 20) else 512
    tn = max(128, min(tn, _round_up(n_nodes, 128)))
    k_blk = min(1024, _round_up(k, 128))

    while True:
        k_pad = _round_up(k, k_blk)
        if (_pass_a_vmem(tn, k_blk, c_pad, itemsize) <= budget
                and _pass_b_vmem(tn, k_pad, c_pad, itemsize) <= budget):
            break
        if tn > 128:
            tn = max(128, ((tn // 2) // 128) * 128)
        elif k_blk > 128:
            k_blk //= 2
        else:
            break   # smallest legal tiles; let the compiler have the final word
    # TODO(synk): for extreme k (k_pad*tn no longer fitting even at tn=128) Pass B
    #             would also need a k-block reduction axis; not needed at these shapes.
    return tn, k_blk, _round_up(k, k_blk), c_pad


# ---------------------------------------------------------------------------
# Pass A: accumulate V^T @ X over node tiles, then apply the Cayley filter.
# ---------------------------------------------------------------------------
def _cayley_reduce_kernel(filt_ref, v_ref, x_ref, vtx_ref, acc_ref):
    # filt_ref : VMEM (k_blk, 1)     f32 precomputed Cayley filter column
    # v_ref    : VMEM (tn, k_blk)    V node tile (compute dtype)
    # x_ref    : VMEM (tn, c_pad)    X node tile (compute dtype)
    # vtx_ref  : VMEM (k_blk, c_pad) output: filt ⊙ (V^T X)
    # acc_ref  : VMEM (k_blk, c_pad) f32 scratch accumulator
    i = pl.program_id(1)                       # node-tile (reduction) axis

    @pl.when(i == 0)
    def _init():
        acc_ref[...] = jnp.zeros_like(acc_ref)

    # (tn, k_blk)^T @ (tn, c_pad) -> (k_blk, c_pad); transposed-LHS MXU contraction,
    # f32 accumulation. No separate V^T array is materialized in HBM.
    acc_ref[...] += lax.dot_general(
        v_ref[...], x_ref[...],
        dimension_numbers=(((0,), (0,)), ((), ())),
        preferred_element_type=jnp.float32)

    @pl.when(i == pl.num_programs(1) - 1)
    def _finalize():
        vtx_ref[...] = (acc_ref[...] * filt_ref[...]).astype(vtx_ref.dtype)


# ---------------------------------------------------------------------------
# Pass B: out_tile = V_tile @ (filt ⊙ V^T X)
# ---------------------------------------------------------------------------
def _cayley_expand_kernel(v_ref, vtx_ref, o_ref):
    o_ref[...] = jnp.dot(v_ref[...], vtx_ref[...],
                         preferred_element_type=jnp.float32).astype(o_ref.dtype)


# ---------------------------------------------------------------------------
# Glue: dense Laplacian + k smallest eigenpairs, Cayley filter precompute.
# ---------------------------------------------------------------------------
def _laplacian_eigs(edge_index, n_nodes, k):
    """get_laplacian(normalization=None) + k smallest eigenpairs (dense eigh)."""
    src = edge_index[0]
    dst = edge_index[1]
    adj = jnp.zeros((n_nodes, n_nodes), jnp.float32).at[src, dst].add(1.0)
    deg = jnp.sum(adj, axis=1)
    lap = jnp.diag(deg) - adj
    eig_vals, eig_vecs = jnp.linalg.eigh(lap)        # ascending
    return eig_vals[:k].astype(jnp.float32), eig_vecs[:, :k].astype(jnp.float32)


def _cayley_filter(eig_vals, r, h, alpha, c0, c_j):
    """filt(lam) = c_0 + 2 * Re( sum_j c_j * ((h(lam-a) - i)/(h(lam-a) + i))**j )."""
    lam = eig_vals.astype(jnp.float32)
    t = (h * (lam - alpha)).astype(jnp.complex64)
    base = (t - 1j) / (t + 1j)
    s = jnp.zeros_like(lam)
    p = jnp.ones_like(base)
    for j in range(1, r + 1):                        # r static -> unrolled
        p = p * base
        s = s + jnp.real(c_j[j - 1] * p)
    return (c0 + 2.0 * s).astype(jnp.float32)


def cayley_conv_lanczos(x, edge_index, *, r, out_channels, eig_ratio=0.2,
                        h=0.1, alpha=0.1, c0=0.1, c_j=None,
                        compute_dtype=jnp.bfloat16):
    n_nodes, in_channels = x.shape
    # The PyTorch `res += v_i @ vi_t_x_Q` only type-checks when in == out channels.
    assert in_channels == out_channels
    k = min(max(int(n_nodes * eig_ratio), 6), n_nodes)

    eig_vals, eig_vecs = _laplacian_eigs(edge_index, n_nodes, k)

    if c_j is None:                                  # module init: c_j = 0.1 + 0.1j
        c_j = jnp.full((r,), 0.1 + 0.1j, jnp.complex64)
    else:
        c_j = jnp.asarray(c_j, jnp.complex64).reshape(r)
    filt = _cayley_filter(eig_vals, r, h, alpha, c0, c_j)        # (k,) f32

    # ---- geometry: generation-aware tiles, lane-dense 128-padded k / channels ----
    cdt = jnp.dtype(compute_dtype)
    itemsize = cdt.itemsize
    vmem_cap = _vmem_capacity_bytes()
    tn, k_blk, k_pad, c_pad = _choose_tiles(n_nodes, k, in_channels, itemsize, vmem_cap)
    n_pad = _round_up(n_nodes, tn)
    grid_n = n_pad // tn
    k_blocks = k_pad // k_blk

    # ---- zero-padded operands (padding is mathematically inert) ----
    v_p = jnp.zeros((n_pad, k_pad), cdt).at[:n_nodes, :k].set(eig_vecs.astype(cdt))
    x_p = jnp.zeros((n_pad, c_pad), cdt).at[:n_nodes, :in_channels].set(x.astype(cdt))
    filt_p = jnp.zeros((k_pad, 1), jnp.float32).at[:k, 0].set(filt)

    # ---- advisory cost estimates ----
    flops = int(2 * n_pad * k_pad * c_pad)
    bytes_a = int(itemsize * (n_pad * k_pad + k_blocks * n_pad * c_pad
                              + k_pad * c_pad) + 4 * k_pad)
    bytes_b = int(itemsize * (n_pad * k_pad + k_pad * c_pad) + 4 * n_pad * c_pad)

    # ---- Pass A: (k_pad, c_pad) = filt ⊙ (V^T X), reduced over node tiles ----
    vtx = pl.pallas_call(
        _cayley_reduce_kernel,
        out_shape=jax.ShapeDtypeStruct((k_pad, c_pad), cdt),
        grid=(k_blocks, grid_n),
        in_specs=[
            pl.BlockSpec((k_blk, 1), lambda kk, i: (kk, 0),
                         pipeline_mode=pl.Buffered(1)),          # filter column
            pl.BlockSpec((tn, k_blk), lambda kk, i: (i, kk)),    # V node tile
            pl.BlockSpec((tn, c_pad), lambda kk, i: (i, 0)),     # X node tile
        ],
        out_specs=pl.BlockSpec((k_blk, c_pad), lambda kk, i: (kk, 0)),
        scratch_shapes=[pltpu.VMEM((k_blk, c_pad), jnp.float32)],
        compiler_params=pltpu.CompilerParams(
            dimension_semantics=("parallel", "arbitrary"),       # reduction axis last
            vmem_limit_bytes=_vmem_limit(
                _pass_a_vmem(tn, k_blk, c_pad, itemsize), vmem_cap)),
        cost_estimate=pl.CostEstimate(flops=flops, transcendentals=0,
                                      bytes_accessed=bytes_a),
    )(filt_p, v_p, x_p)

    # ---- Pass B: out_tile = V_tile @ vtx, independent node tiles ----
    out_p = pl.pallas_call(
        _cayley_expand_kernel,
        out_shape=jax.ShapeDtypeStruct((n_pad, c_pad), jnp.float32),
        grid=(grid_n,),
        in_specs=[
            pl.BlockSpec((tn, k_pad), lambda i: (i, 0)),         # V node tile
            pl.BlockSpec((k_pad, c_pad), lambda i: (0, 0),
                         pipeline_mode=pl.Buffered(1)),          # filtered V^T X
        ],
        out_specs=pl.BlockSpec((tn, c_pad), lambda i: (i, 0)),
        compiler_params=pltpu.CompilerParams(
            dimension_semantics=("parallel",),
            vmem_limit_bytes=_vmem_limit(
                _pass_b_vmem(tn, k_pad, c_pad, itemsize), vmem_cap)),
        cost_estimate=pl.CostEstimate(flops=flops, transcendentals=0,
                                      bytes_accessed=bytes_b),
    )(v_p, vtx)

    return out_p[:n_nodes, :out_channels], eig_vals, eig_vecs


def _reference_forward(x, eig_vals, eig_vecs, r, h, alpha, c0, c_j):
    """Numpy mirror of the PyTorch per-eigenvector loop."""
    x = np.asarray(x, np.float64)
    lam = np.asarray(eig_vals, np.float64).reshape(-1)
    vecs = np.asarray(eig_vecs, np.float64)
    res = np.zeros_like(x)
    for i in range(lam.shape[0]):
        t = h * (lam[i] - alpha)
        base = (t - 1j) / (t + 1j)
        rc = sum(c_j[j - 1] * base ** j for j in range(1, r + 1))
        filt = c0 + 2.0 * rc.real
        v_i = vecs[:, i:i + 1]
        res += v_i @ ((v_i.T @ x) * filt)
    return res


if __name__ == "__main__":
    key = jax.random.PRNGKey(0)
    n_nodes, channels, r = 32, 16, 3          # k = max(int(32*0.2), 6) = 6

    x = jax.random.normal(key, (n_nodes, channels), jnp.float32)

    # Deterministic undirected path graph, PyG-style edge_index (2, E), both directions.
    src = np.arange(n_nodes - 1)
    dst = src + 1
    edge_index = jnp.asarray(
        np.stack([np.concatenate([src, dst]), np.concatenate([dst, src])]),
        jnp.int32)

    c_j = np.full((r,), 0.1 + 0.1j, np.complex128)

    # f32 compute path: tight check against a numpy mirror of the PyTorch forward.
    out_f32, eig_vals, eig_vecs = cayley_conv_lanczos(
        x, edge_index, r=r, out_channels=channels, c_j=c_j,
        compute_dtype=jnp.float32)
    out_f32 = jax.block_until_ready(out_f32)
    ref = _reference_forward(x, eig_vals, eig_vecs, r, 0.1, 0.1, 0.1, c_j)
    np.testing.assert_allclose(np.asarray(out_f32, np.float64), ref,
                               rtol=2e-3, atol=2e-3)

    # Default bf16 MXU path (f32 accumulation): looser tolerance for bf16 inputs.
    out_bf16, _, _ = cayley_conv_lanczos(x, edge_index, r=r, out_channels=channels,
                                         c_j=c_j)
    out_bf16 = jax.block_until_ready(out_bf16)
    np.testing.assert_allclose(np.asarray(out_bf16, np.float64), ref,
                               rtol=5e-2, atol=5e-3)

    print("KERNEL_OK")
</pallas_src>

<mosaic_0001>
module attributes {stable_mosaic.version = 11 : i64} {
  func.func @_cayley_reduce_kernel(%arg0: i32, %arg1: i32, %arg2: memref<128x1xf32, #tpu.memory_space<vmem>>, %arg3: memref<128x128xf32, #tpu.memory_space<vmem>>, %arg4: memref<128x128xf32, #tpu.memory_space<vmem>>, %arg5: memref<128x128xf32, #tpu.memory_space<vmem>>, %arg6: memref<128x128xf32, #tpu.memory_space<vmem>>) attributes {dimension_semantics = [#tpu.dimension_semantics<parallel>, #tpu.dimension_semantics<arbitrary>], iteration_bounds = array<i64: 1, 1>, scalar_prefetch = 0 : i64, scratch_operands = 1 : i64, tpu.core_type = #tpu.core_type<tc>, window_params = [{pipeline_mode = #tpu.pipeline_mode<synchronous>, transform_indices = @transform_0, window_bounds = array<i64: 128, 1>}, {transform_indices = @transform_1, window_bounds = array<i64: 128, 128>}, {transform_indices = @transform_2, window_bounds = array<i64: 128, 128>}, {transform_indices = @transform_3, window_bounds = array<i64: 128, 128>}]} {
    %c0_i32 = arith.constant 0 : i32
    %0 = arith.cmpi eq, %arg1, %c0_i32 : i32
    %1 = arith.extui %0 : i1 to i32
    %c0_i32_0 = arith.constant 0 : i32
    %2 = arith.cmpi ne, %1, %c0_i32_0 : i32
    scf.if %2 {
      %cst_10 = arith.constant 0.000000e+00 : f32
      %12 = vector.broadcast %cst_10 : f32 to vector<128x128xf32>
      %c0_11 = arith.constant 0 : index
      %c0_12 = arith.constant 0 : index
      %13 = vector.load %arg6[%c0_11, %c0_12] : memref<128x128xf32, #tpu.memory_space<vmem>>, vector<128x128xf32>
      tpu.vector_store %arg6[%c0_11, %c0_12], %12 {strides = array<i32>} : memref<128x128xf32, #tpu.memory_space<vmem>>, vector<128x128xf32>,
    } else {
    }
    %c0 = arith.constant 0 : index
    %c0_1 = arith.constant 0 : index
    %3 = vector.load %arg6[%c0, %c0_1] : memref<128x128xf32, #tpu.memory_space<vmem>>, vector<128x128xf32>
    %c0_2 = arith.constant 0 : index
    %c0_3 = arith.constant 0 : index
    %4 = vector.load %arg3[%c0_2, %c0_3] : memref<128x128xf32, #tpu.memory_space<vmem>>, vector<128x128xf32>
    %c0_4 = arith.constant 0 : index
    %c0_5 = arith.constant 0 : index
    %5 = vector.load %arg4[%c0_4, %c0_5] : memref<128x128xf32, #tpu.memory_space<vmem>>, vector<128x128xf32>
    %cst = arith.constant dense<0.000000e+00> : vector<128x128xf32>
    %6 = tpu.matmul %4, %5, %cst {dimension_numbers = #tpu.dot_dimension_numbers<[0], [0], [1], [1], [0, 1, 1, 1], [], []>} : vector<128x128xf32>, vector<128x128xf32>, vector<128x128xf32> -> vector<128x128xf32>
    %7 = arith.addf %3, %6 : vector<128x128xf32>
    %c0_6 = arith.constant 0 : index
    %c0_7 = arith.constant 0 : index
    %8 = vector.load %arg6[%c0_6, %c0_7] : memref<128x128xf32, #tpu.memory_space<vmem>>, vector<128x128xf32>
    tpu.vector_store %arg6[%c0_6, %c0_7], %7 {strides = array<i32>} : memref<128x128xf32, #tpu.memory_space<vmem>>, vector<128x128xf32>,
    %c0_i32_8 = arith.constant 0 : i32
    %9 = arith.cmpi eq, %arg1, %c0_i32_8 : i32
    %10 = arith.extui %9 : i1 to i32
    %c0_i32_9 = arith.constant 0 : i32
    %11 = arith.cmpi ne, %10, %c0_i32_9 : i32
    scf.if %11 {
      %c0_10 = arith.constant 0 : index
      %c0_11 = arith.constant 0 : index
      %12 = vector.load %arg6[%c0_10, %c0_11] : memref<128x128xf32, #tpu.memory_space<vmem>>, vector<128x128xf32>
      %c0_12 = arith.constant 0 : index
      %c0_13 = arith.constant 0 : index
      %13 = vector.load %arg2[%c0_12, %c0_13] : memref<128x1xf32, #tpu.memory_space<vmem>>, vector<128x1xf32>
      %14 = vector.broadcast %13 : vector<128x1xf32> to vector<128x128xf32>
      %15 = arith.mulf %12, %14 : vector<128x128xf32>
      %c0_14 = arith.constant 0 : index
      %c0_15 = arith.constant 0 : index
      %16 = vector.load %arg5[%c0_14, %c0_15] : memref<128x128xf32, #tpu.memory_space<vmem>>, vector<128x128xf32>
      tpu.vector_store %arg5[%c0_14, %c0_15], %15 {strides = array<i32>} : memref<128x128xf32, #tpu.memory_space<vmem>>, vector<128x128xf32>,
    } else {
    }
    return
  }
  func.func @transform_0(%arg0: i32, %arg1: i32) -> (i32, i32) {
    %c0_i32 = arith.constant 0 : i32
    %c0_i32_0 = arith.constant 0 : i32
    return %arg0, %c0_i32 : i32, i32
  }
  func.func @transform_1(%arg0: i32, %arg1: i32) -> (i32, i32) {
    %c0_i32 = arith.constant 0 : i32
    return %arg1, %arg0 : i32, i32
  }
  func.func @transform_2(%arg0: i32, %arg1: i32) -> (i32, i32) {
    %c0_i32 = arith.constant 0 : i32
    %c0_i32_0 = arith.constant 0 : i32
    return %arg1, %c0_i32 : i32, i32
  }
  func.func @transform_3(%arg0: i32, %arg1: i32) -> (i32, i32) {
    %c0_i32 = arith.constant 0 : i32
    %c0_i32_0 = arith.constant 0 : i32
    return %arg0, %c0_i32 : i32, i32
  }
}

</mosaic_0001>

<llo_original>
// kernel: tpu_custom_call.1
$region0: #{tpu_custom_call.1}
  #allocation0 [shape = 'u32[]', space=smem, size = 0x4, offset = 0x4, fixed_abs, tag = 'smem constant byte address 0x4 - core index']
  #allocation1 [shape = 'u32[144,128]{1,0:T(1,128)}', space=vmem, size = 0x12000, scoped, tag = 'internal scratch']
  #allocation2 [shape = 'f32[128,128]{1,0:T(8,128)}', space=vmem, size = 0x10000, scoped, tag = 'scratch operand']
  %s0 = inlined_call_operand.vmem [shape: f32[128,1], index: 0, kind: input, shape index: {}]
  %s1 = inlined_call_operand.vmem [shape: f32[128,128], index: 1, kind: input, shape index: {}]
  %s2 = inlined_call_operand.hbm [shape: f32[128,128], index: 2, kind: input, shape index: {}]
  %s3 = inlined_call_operand.hbm [shape: f32[128,128], index: 3, kind: output, shape index: {}]
  %s4 = sld [smem:[#allocation0]]
  $region34: #{tpu_custom_call.1} parent=0
    _
  %s6 = ssub.s32 1, %s4
  %s7 = scalar_select 0, %s6, %s4
  $region1: #{tpu_custom_call.1} parent=0
    #allocation3 [shape = 'u8[65536]{0}', space=vmem, size = 0x10000, scoped, tag = 'input window, operand 2, single buffered']
    #allocation4 [shape = 's32[1]{0}', space=sflag, size = 0x4, scoped, tag = 'scoped memory for tpu_custom_call.1']
    #allocation5 [shape = 's32[1]{0}', space=sflag, size = 0x4, scoped, tag = 'scoped memory for tpu_custom_call.1']
    #allocation6 [shape = 'u8[65536]{0}', space=vmem, size = 0x10000, scoped, tag = 'output window, operand 0, single buffered']
    %8 = vsyncpa [#allocation4], 0
    %9 = vsyncpa [#allocation5], 0
    // Predicated region
    $region2: #{tpu_custom_call.1} parent=1 // pred_check
      _
    $region3: #{tpu_custom_call.1} parent=1 // pred_check_branch
      %11 = sbr.rel (0) target = $region5
    $region4: #{tpu_custom_call.1} parent=1 // pred_region
      _
    $region5: #{tpu_custom_call.1} parent=1 // pred_fallthru
      _
    // Predicated region
    $region6: #{tpu_custom_call.1} parent=1 // pred_check
      _
    $region7: #{tpu_custom_call.1} parent=1 // pred_check_branch
      %13 = sbr.rel (0) target = $region9
    $region8: #{tpu_custom_call.1} parent=1 // pred_region
      _
    $region9: #{tpu_custom_call.1} parent=1 // pred_fallthru
      _
    // Predicated region
    $region10: #{tpu_custom_call.1} parent=1 // pred_check
      _
    $region11: #{tpu_custom_call.1} parent=1 // pred_check_branch
      %15 = sbr.rel (0) target = $region13
    $region12: #{tpu_custom_call.1} parent=1 // pred_region
      %s17 = ssub.s32 2048, 2048
      %18 = vsyncadd [#allocation4], %s17
      %s19 = sshll.u32 [#allocation3], 4
      %s20 = int_to_ptr.vmem [resolvable:$true] %s19
      %25 = dma.hbm_to_vmem [thread:$0]  %s2, 2048, %s20, [#allocation4], 128, 128, 8
    $region13: #{tpu_custom_call.1} parent=1 // pred_fallthru
      _
    // Predicated region
    $region14: #{tpu_custom_call.1} parent=1 // pred_check
      _
    $region15: #{tpu_custom_call.1} parent=1 // pred_check_branch
      %27 = sbr.rel (0) target = $region17
    $region16: #{tpu_custom_call.1} parent=1 // pred_region
      %28 = dma.done [#allocation4], 2048
    $region17: #{tpu_custom_call.1} parent=1 // pred_fallthru
      _
    %p29 = scmp.eq.s32.totalorder 0, 0
    // Predicated region
    $region18: #{tpu_custom_call.1} parent=1 // pred_check
      %p30 = pneg %p29
    $region19: #{tpu_custom_call.1} parent=1 // pred_check_branch
      %32 = sbr.rel (%p30) target = $region21
    $region20: #{tpu_custom_call.1} parent=1 // pred_region
      %33 = vst [vmem:[#allocation2] sm:$0xff] 0.0
      %34 = vst [vmem:[#allocation2 + $0x8] sm:$0xff] 0.0
      %35 = vst [vmem:[#allocation2 + $0x10] sm:$0xff] 0.0
      %36 = vst [vmem:[#allocation2 + $0x18] sm:$0xff] 0.0
      %37 = vst [vmem:[#allocation2 + $0x20] sm:$0xff] 0.0
      %38 = vst [vmem:[#allocation2 + $0x28] sm:$0xff] 0.0
      %39 = vst [vmem:[#allocation2 + $0x30] sm:$0xff] 0.0
      %40 = vst [vmem:[#allocation2 + $0x38] sm:$0xff] 0.0
      %41 = vst [vmem:[#allocation2 + $0x40] sm:$0xff] 0.0
      %42 = vst [vmem:[#allocation2 + $0x48] sm:$0xff] 0.0
      %43 = vst [vmem:[#allocation2 + $0x50] sm:$0xff] 0.0
      %44 = vst [vmem:[#allocation2 + $0x58] sm:$0xff] 0.0
      %45 = vst [vmem:[#allocation2 + $0x60] sm:$0xff] 0.0
      %46 = vst [vmem:[#allocation2 + $0x68] sm:$0xff] 0.0
      %47 = vst [vmem:[#allocation2 + $0x70] sm:$0xff] 0.0
      %48 = vst [vmem:[#allocation2 + $0x78] sm:$0xff] 0.0
    $region21: #{tpu_custom_call.1} parent=1 // pred_fallthru
      _
    %v49 = vld [vmem:[#allocation2] sm:$0xff]
    %v50 = vld [vmem:[#allocation2 + $0x8] sm:$0xff]
    %v51 = vld [vmem:[#allocation2 + $0x10] sm:$0xff]
    %v52 = vld [vmem:[#allocation2 + $0x18] sm:$0xff]
    %v53 = vld [vmem:[#allocation2 + $0x20] sm:$0xff]
    %v54 = vld [vmem:[#allocation2 + $0x28] sm:$0xff]
    %v55 = vld [vmem:[#allocation2 + $0x30] sm:$0xff]
    %v56 = vld [vmem:[#allocation2 + $0x38] sm:$0xff]
    %v57 = vld [vmem:[#allocation2 + $0x40] sm:$0xff]
    %v58 = vld [vmem:[#allocation2 + $0x48] sm:$0xff]
    %v59 = vld [vmem:[#allocation2 + $0x50] sm:$0xff]
    %v60 = vld [vmem:[#allocation2 + $0x58] sm:$0xff]
    %v61 = vld [vmem:[#allocation2 + $0x60] sm:$0xff]
    %v62 = vld [vmem:[#allocation2 + $0x68] sm:$0xff]
    %v63 = vld [vmem:[#allocation2 + $0x70] sm:$0xff]
    %v64 = vld [vmem:[#allocation2 + $0x78] sm:$0xff]
    %v65 = vld [vmem:[%s1] sm:$0xff]
    %v66 = vld [vmem:[%s1 + $0x8] sm:$0xff]
    %v67 = vld [vmem:[%s1 + $0x10] sm:$0xff]
    %v68 = vld [vmem:[%s1 + $0x18] sm:$0xff]
    %v69 = vld [vmem:[%s1 + $0x20] sm:$0xff]
    %v70 = vld [vmem:[%s1 + $0x28] sm:$0xff]
    %v71 = vld [vmem:[%s1 + $0x30] sm:$0xff]
    %v72 = vld [vmem:[%s1 + $0x38] sm:$0xff]
    %v73 = vld [vmem:[%s1 + $0x40] sm:$0xff]
    %v74 = vld [vmem:[%s1 + $0x48] sm:$0xff]
    %v75 = vld [vmem:[%s1 + $0x50] sm:$0xff]
    %v76 = vld [vmem:[%s1 + $0x58] sm:$0xff]
    %v77 = vld [vmem:[%s1 + $0x60] sm:$0xff]
    %v78 = vld [vmem:[%s1 + $0x68] sm:$0xff]
    %v79 = vld [vmem:[%s1 + $0x70] sm:$0xff]
    %v80 = vld [vmem:[%s1 + $0x78] sm:$0xff]
    %v81 = vld [vmem:[#allocation3] sm:$0xff]
    %v82 = vld [vmem:[#allocation3 + $0x8] sm:$0xff]
    %v83 = vld [vmem:[#allocation3 + $0x10] sm:$0xff]
    %v84 = vld [vmem:[#allocation3 + $0x18] sm:$0xff]
    %v85 = vld [vmem:[#allocation3 + $0x20] sm:$0xff]
    %v86 = vld [vmem:[#allocation3 + $0x28] sm:$0xff]
    %v87 = vld [vmem:[#allocation3 + $0x30] sm:$0xff]
    %v88 = vld [vmem:[#allocation3 + $0x38] sm:$0xff]
    %v89 = vld [vmem:[#allocation3 + $0x40] sm:$0xff]
    %v90 = vld [vmem:[#allocation3 + $0x48] sm:$0xff]
    %v91 = vld [vmem:[#allocation3 + $0x50] sm:$0xff]
    %v92 = vld [vmem:[#allocation3 + $0x58] sm:$0xff]
    %v93 = vld [vmem:[#allocation3 + $0x60] sm:$0xff]
    %v94 = vld [vmem:[#allocation3 + $0x68] sm:$0xff]
    %v95 = vld [vmem:[#allocation3 + $0x70] sm:$0xff]
    %v96 = vld [vmem:[#allocation3 + $0x78] sm:$0xff]
    %97 = vxpose.xlu0.b32.start [1/16] %v65, 128
    %98 = vxpose.xlu0.b32.cont [2/16] %v66, 128
    %99 = vxpose.xlu0.b32.cont [3/16] %v67, 128
    %100 = vxpose.xlu0.b32.cont [4/16] %v68, 128
    %101 = vxpose.xlu0.b32.cont [5/16] %v69, 128
    %102 = vxpose.xlu0.b32.cont [6/16] %v70, 128
    %103 = vxpose.xlu0.b32.cont [7/16] %v71, 128
    %104 = vxpose.xlu0.b32.cont [8/16] %v72, 128
    %105 = vxpose.xlu0.b32.cont [9/16] %v73, 128
    %106 = vxpose.xlu0.b32.cont [10/16] %v74, 128
    %107 = vxpose.xlu0.b32.cont [11/16] %v75, 128
    %108 = vxpose.xlu0.b32.cont [12/16] %v76, 128
    %109 = vxpose.xlu0.b32.cont [13/16] %v77, 128
    %110 = vxpose.xlu0.b32.cont [14/16] %v78, 128
    %111 = vxpose.xlu0.b32.cont [15/16] %v79, 128
    %112 = vxpose.xlu0.b32.end [16/16] %v80, 128
    %v113 = vpop.trf.xlu0
    %v114 = vpop.trf.xlu0
    %v115 = vpop.trf.xlu0
    %v116 = vpop.trf.xlu0
    %v117 = vpop.trf.xlu0
    %v118 = vpop.trf.xlu0
    %v119 = vpop.trf.xlu0
    %v120 = vpop.trf.xlu0
    %v121 = vpop.trf.xlu0
    %v122 = vpop.trf.xlu0
    %v123 = vpop.trf.xlu0
    %v124 = vpop.trf.xlu0
    %v125 = vpop.trf.xlu0
    %v126 = vpop.trf.xlu0
    %v127 = vpop.trf.xlu0
    %v128 = vpop.trf.xlu0
    %129 = vmatprep.subr.mxu0 0.0
    %130 = vmatpush1.msra.mxu0 %v81
    %131 = vmatprep.subr.mxu0 0.0
    %132 = vmatpush1.msra.mxu0 %v82
    %133 = vmatprep.subr.mxu0 0.0
    %134 = vmatpush1.msra.mxu0 %v83
    %135 = vmatprep.subr.mxu0 0.0
    %136 = vmatpush1.msra.mxu0 %v84
    %137 = vmatprep.subr.mxu0 0.0
    %138 = vmatpush1.msra.mxu0 %v85
    %139 = vmatprep.subr.mxu0 0.0
    %140 = vmatpush1.msra.mxu0 %v86
    %141 = vmatprep.subr.mxu0 0.0
    %142 = vmatpush1.msra.mxu0 %v87
    %143 = vmatprep.subr.mxu0 0.0
    %144 = vmatpush1.msra.mxu0 %v88
    %145 = vmatprep.subr.mxu0 0.0
    %146 = vmatpush1.msra.mxu0 %v89
    %147 = vmatprep.subr.mxu0 0.0
    %148 = vmatpush1.msra.mxu0 %v90
    %149 = vmatprep.subr.mxu0 0.0
    %150 = vmatpush1.msra.mxu0 %v91
    %151 = vmatprep.subr.mxu0 0.0
    %152 = vmatpush1.msra.mxu0 %v92
    %153 = vmatprep.subr.mxu0 0.0
    %154 = vmatpush1.msra.mxu0 %v93
    %155 = vmatprep.subr.mxu0 0.0
    %156 = vmatpush1.msra.mxu0 %v94
    %157 = vmatprep.subr.mxu0 0.0
    %158 = vmatpush1.msra.mxu0 %v95
    %159 = vmatprep.subr.mxu0 0.0
    %160 = vmatpush1.msra.mxu0 %v96
    %161 = vmatprep.subr.mxu0 0.0
    %162 = vmatpush1.msra.mxu0 0.0
    %163 = vmatprep.subr.mxu0 0.0
    %164 = vmatpush1.msra.mxu0 0.0
    %165 = vmatprep.subr.mxu0 0.0
    %166 = vmatpush1.msra.mxu0 0.0
    %167 = vmatprep.subr.mxu0 0.0
    %168 = vmatpush1.msra.mxu0 0.0
    %169 = vmatprep.subr.mxu0 0.0
    %170 = vmatpush1.msra.mxu0 0.0
    %171 = vmatprep.subr.mxu0 0.0
    %172 = vmatpush1.msra.mxu0 0.0
    %173 = vmatprep.subr.mxu0 0.0
    %174 = vmatpush1.msra.mxu0 0.0
    %175 = vmatprep.subr.mxu0 0.0
    %176 = vmatpush1.msra.mxu0 0.0
    %177 = vmatprep.subr.mxu0 0.0
    %178 = vmatpush1.msra.mxu0 0.0
    %179 = vmatprep.subr.mxu0 0.0
    %180 = vmatpush1.msra.mxu0 0.0
    %181 = vmatprep.subr.mxu0 0.0
    %182 = vmatpush1.msra.mxu0 0.0
    %183 = vmatprep.subr.mxu0 0.0
    %184 = vmatpush1.msra.mxu0 0.0
    %185 = vmatprep.subr.mxu0 0.0
    %186 = vmatpush1.msra.mxu0 0.0
    %187 = vmatprep.subr.mxu0 0.0
    %188 = vmatpush1.msra.mxu0 0.0
    %189 = vmatprep.subr.mxu0 0.0
    %190 = vmatpush1.msra.mxu0 0.0
    %191 = vmatprep.subr.mxu0 0.0
    %192 = vmatpush1.msra.mxu0 0.0
    %193 = vmatprep.mubr.f32.mxu0 0.0
    %194 = vmatmul.mubr.f32.gmra.mrb[0].mxu0 %v113
    %v195 = vpop.f32.mrb[0].mxu0
    %v196 = vadd.f32 0.0, %v195
    %v197 = vpop.f32.mrb[0].mxu0
    %198 = vmatprep.mubr.f32.mxu0 0.0
    %199 = vmatmul.mubr.f32.gmra.mrb[0].mxu0 %v114
    %v200 = vpop.f32.mrb[0].mxu0
    %v201 = vadd.f32 0.0, %v200
    %v202 = vpop.f32.mrb[0].mxu0
    %203 = vmatprep.mubr.f32.mxu0 0.0
    %204 = vmatmul.mubr.f32.gmra.mrb[0].mxu0 %v115
    %v205 = vpop.f32.mrb[0].mxu0
    %v206 = vadd.f32 0.0, %v205
    %v207 = vpop.f32.mrb[0].mxu0
    %208 = vmatprep.mubr.f32.mxu0 0.0
    %209 = vmatmul.mubr.f32.gmra.mrb[0].mxu0 %v116
    %v210 = vpop.f32.mrb[0].mxu0
    %v211 = vadd.f32 0.0, %v210
    %v212 = vpop.f32.mrb[0].mxu0
    %213 = vmatprep.mubr.f32.mxu0 0.0
    %214 = vmatmul.mubr.f32.gmra.mrb[0].mxu0 %v117
    %v215 = vpop.f32.mrb[0].mxu0
    %v216 = vadd.f32 0.0, %v215
    %v217 = vpop.f32.mrb[0].mxu0
    %218 = vmatprep.mubr.f32.mxu0 0.0
    %219 = vmatmul.mubr.f32.gmra.mrb[0].mxu0 %v118
    %v220 = vpop.f32.mrb[0].mxu0
    %v221 = vadd.f32 0.0, %v220
    %v222 = vpop.f32.mrb[0].mxu0
    %223 = vmatprep.mubr.f32.mxu0 0.0
    %224 = vmatmul.mubr.f32.gmra.mrb[0].mxu0 %v119
    %v225 = vpop.f32.mrb[0].mxu0
    %v226 = vadd.f32 0.0, %v225
    %v227 = vpop.f32.mrb[0].mxu0
    %228 = vmatprep.mubr.f32.mxu0 0.0
    %229 = vmatmul.mubr.f32.gmra.mrb[0].mxu0 %v120
    %v230 = vpop.f32.mrb[0].mxu0
    %v231 = vadd.f32 0.0, %v230
    %v232 = vpop.f32.mrb[0].mxu0
    %233 = vmatprep.mubr.f32.mxu0 0.0
    %234 = vmatmul.mubr.f32.gmra.mrb[0].mxu0 %v121
    %v235 = vpop.f32.mrb[0].mxu0
    %v236 = vadd.f32 0.0, %v235
    %v237 = vpop.f32.mrb[0].mxu0
    %238 = vmatprep.mubr.f32.mxu0 0.0
    %239 = vmatmul.mubr.f32.gmra.mrb[0].mxu0 %v122
    %v240 = vpop.f32.mrb[0].mxu0
    %v241 = vadd.f32 0.0, %v240
    %v242 = vpop.f32.mrb[0].mxu0
    %243 = vmatprep.mubr.f32.mxu0 0.0
    %244 = vmatmul.mubr.f32.gmra.mrb[0].mxu0 %v123
    %v245 = vpop.f32.mrb[0].mxu0
    %v246 = vadd.f32 0.0, %v245
    %v247 = vpop.f32.mrb[0].mxu0
    %248 = vmatprep.mubr.f32.mxu0 0.0
    %249 = vmatmul.mubr.f32.gmra.mrb[0].mxu0 %v124
    %v250 = vpop.f32.mrb[0].mxu0
    %v251 = vadd.f32 0.0, %v250
    %v252 = vpop.f32.mrb[0].mxu0
    %253 = vmatprep.mubr.f32.mxu0 0.0
    %254 = vmatmul.mubr.f32.gmra.mrb[0].mxu0 %v125
    %v255 = vpop.f32.mrb[0].mxu0
    %v256 = vadd.f32 0.0, %v255
    %v257 = vpop.f32.mrb[0].mxu0
    %258 = vmatprep.mubr.f32.mxu0 0.0
    %259 = vmatmul.mubr.f32.gmra.mrb[0].mxu0 %v126
    %v260 = vpop.f32.mrb[0].mxu0
    %v261 = vadd.f32 0.0, %v260
    %v262 = vpop.f32.mrb[0].mxu0
    %263 = vmatprep.mubr.f32.mxu0 0.0
    %264 = vmatmul.mubr.f32.gmra.mrb[0].mxu0 %v127
    %v265 = vpop.f32.mrb[0].mxu0
    %v266 = vadd.f32 0.0, %v265
    %v267 = vpop.f32.mrb[0].mxu0
    %268 = vmatprep.mubr.f32.mxu0 0.0
    %269 = vmatmul.mubr.f32.gmra.mrb[0].mxu0 %v128
    %v270 = vpop.f32.mrb[0].mxu0
    %v271 = vadd.f32 0.0, %v270
    %v272 = vpop.f32.mrb[0].mxu0
    %273 = vdwg.mxu0
    %v274 = vadd.f32 %v49, %v196
    %v275 = vadd.f32 %v50, %v201
    %v276 = vadd.f32 %v51, %v206
    %v277 = vadd.f32 %v52, %v211
    %v278 = vadd.f32 %v53, %v216
    %v279 = vadd.f32 %v54, %v221
    %v280 = vadd.f32 %v55, %v226
    %v281 = vadd.f32 %v56, %v231
    %v282 = vadd.f32 %v57, %v236
    %v283 = vadd.f32 %v58, %v241
    %v284 = vadd.f32 %v59, %v246
    %v285 = vadd.f32 %v60, %v251
    %v286 = vadd.f32 %v61, %v256
    %v287 = vadd.f32 %v62, %v261
    %v288 = vadd.f32 %v63, %v266
    %v289 = vadd.f32 %v64, %v271
    %290 = vst [vmem:[#allocation2] sm:$0xff] %v274
    %291 = vst [vmem:[#allocation2 + $0x8] sm:$0xff] %v275
    %292 = vst [vmem:[#allocation2 + $0x10] sm:$0xff] %v276
    %293 = vst [vmem:[#allocation2 + $0x18] sm:$0xff] %v277
    %294 = vst [vmem:[#allocation2 + $0x20] sm:$0xff] %v278
    %295 = vst [vmem:[#allocation2 + $0x28] sm:$0xff] %v279
    %296 = vst [vmem:[#allocation2 + $0x30] sm:$0xff] %v280
    %297 = vst [vmem:[#allocation2 + $0x38] sm:$0xff] %v281
    %298 = vst [vmem:[#allocation2 + $0x40] sm:$0xff] %v282
    %299 = vst [vmem:[#allocation2 + $0x48] sm:$0xff] %v283
    %300 = vst [vmem:[#allocation2 + $0x50] sm:$0xff] %v284
    %301 = vst [vmem:[#allocation2 + $0x58] sm:$0xff] %v285
    %302 = vst [vmem:[#allocation2 + $0x60] sm:$0xff] %v286
    %303 = vst [vmem:[#allocation2 + $0x68] sm:$0xff] %v287
    %304 = vst [vmem:[#allocation2 + $0x70] sm:$0xff] %v288
    %305 = vst [vmem:[#allocation2 + $0x78] sm:$0xff] %v289
    // Predicated region
    $region22: #{tpu_custom_call.1} parent=1 // pred_check
      %p306 = pneg %p29
    $region23: #{tpu_custom_call.1} parent=1 // pred_check_branch
      %308 = sbr.rel (%p306) target = $region25
    $region24: #{tpu_custom_call.1} parent=1 // pred_region
      %v309 = vld [vmem:[#allocation2] sm:$0xff]
      %v310 = vld [vmem:[#allocation2 + $0x8] sm:$0xff]
      %v311 = vld [vmem:[#allocation2 + $0x10] sm:$0xff]
      %v312 = vld [vmem:[#allocation2 + $0x18] sm:$0xff]
      %v313 = vld [vmem:[#allocation2 + $0x20] sm:$0xff]
      %v314 = vld [vmem:[#allocation2 + $0x28] sm:$0xff]
      %v315 = vld [vmem:[#allocation2 + $0x30] sm:$0xff]
      %v316 = vld [vmem:[#allocation2 + $0x38] sm:$0xff]
      %v317 = vld [vmem:[#allocation2 + $0x40] sm:$0xff]
      %v318 = vld [vmem:[#allocation2 + $0x48] sm:$0xff]
      %v319 = vld [vmem:[#allocation2 + $0x50] sm:$0xff]
      %v320 = vld [vmem:[#allocation2 + $0x58] sm:$0xff]
      %v321 = vld [vmem:[#allocation2 + $0x60] sm:$0xff]
      %v322 = vld [vmem:[#allocation2 + $0x68] sm:$0xff]
      %v323 = vld [vmem:[#allocation2 + $0x70] sm:$0xff]
      %v324 = vld [vmem:[#allocation2 + $0x78] sm:$0xff]
      %v325 = vld [vmem:[%s0] sm:$0xff]
      %v326 = vld [vmem:[%s0 + $0x8] sm:$0xff]
      %v327 = vld [vmem:[%s0 + $0x10] sm:$0xff]
      %v328 = vld [vmem:[%s0 + $0x18] sm:$0xff]
      %v329 = vld [vmem:[%s0 + $0x20] sm:$0xff]
      %v330 = vld [vmem:[%s0 + $0x28] sm:$0xff]
      %v331 = vld [vmem:[%s0 + $0x30] sm:$0xff]
      %v332 = vld [vmem:[%s0 + $0x38] sm:$0xff]
      %v333 = vld [vmem:[%s0 + $0x40] sm:$0xff]
      %v334 = vld [vmem:[%s0 + $0x48] sm:$0xff]
      %v335 = vld [vmem:[%s0 + $0x50] sm:$0xff]
      %v336 = vld [vmem:[%s0 + $0x58] sm:$0xff]
      %v337 = vld [vmem:[%s0 + $0x60] sm:$0xff]
      %v338 = vld [vmem:[%s0 + $0x68] sm:$0xff]
      %v339 = vld [vmem:[%s0 + $0x70] sm:$0xff]
      %v340 = vld [vmem:[%s0 + $0x78] sm:$0xff]
      %342 = vset.pattern.permute.xlu0 0
      %343 = vperm.xlu0 %342, %v325
      %v344 = vpop.permute.xlu0 %343
      %347 = vset.pattern.permute.xlu0 0
      %348 = vperm.xlu0 %347, %v326
      %v349 = vpop.permute.xlu0 %348
      %352 = vset.pattern.permute.xlu0 0
      %353 = vperm.xlu0 %352, %v327
      %v354 = vpop.permute.xlu0 %353
      %357 = vset.pattern.permute.xlu0 0
      %358 = vperm.xlu0 %357, %v328
      %v359 = vpop.permute.xlu0 %358
      %362 = vset.pattern.permute.xlu0 0
      %363 = vperm.xlu0 %362, %v329
      %v364 = vpop.permute.xlu0 %363
      %367 = vset.pattern.permute.xlu0 0
      %368 = vperm.xlu0 %367, %v330
      %v369 = vpop.permute.xlu0 %368
      %372 = vset.pattern.permute.xlu0 0
      %373 = vperm.xlu0 %372, %v331
      %v374 = vpop.permute.xlu0 %373
      %377 = vset.pattern.permute.xlu0 0
      %378 = vperm.xlu0 %377, %v332
      %v379 = vpop.permute.xlu0 %378
      %382 = vset.pattern.permute.xlu0 0
      %383 = vperm.xlu0 %382, %v333
      %v384 = vpop.permute.xlu0 %383
      %387 = vset.pattern.permute.xlu0 0
      %388 = vperm.xlu0 %387, %v334
      %v389 = vpop.permute.xlu0 %388
      %392 = vset.pattern.permute.xlu0 0
      %393 = vperm.xlu0 %392, %v335
      %v394 = vpop.permute.xlu0 %393
      %397 = vset.pattern.permute.xlu0 0
      %398 = vperm.xlu0 %397, %v336
      %v399 = vpop.permute.xlu0 %398
      %402 = vset.pattern.permute.xlu0 0
      %403 = vperm.xlu0 %402, %v337
      %v404 = vpop.permute.xlu0 %403
      %407 = vset.pattern.permute.xlu0 0
      %408 = vperm.xlu0 %407, %v338
      %v409 = vpop.permute.xlu0 %408
      %412 = vset.pattern.permute.xlu0 0
      %413 = vperm.xlu0 %412, %v339
      %v414 = vpop.permute.xlu0 %413
      %417 = vset.pattern.permute.xlu0 0
      %418 = vperm.xlu0 %417, %v340
      %v419 = vpop.permute.xlu0 %418
      %v421 = vmul.f32 %v309, %v344
      %v422 = vmul.f32 %v310, %v349
      %v423 = vmul.f32 %v311, %v354
      %v424 = vmul.f32 %v312, %v359
      %v425 = vmul.f32 %v313, %v364
      %v426 = vmul.f32 %v314, %v369
      %v427 = vmul.f32 %v315, %v374
      %v428 = vmul.f32 %v316, %v379
      %v429 = vmul.f32 %v317, %v384
      %v430 = vmul.f32 %v318, %v389
      %v431 = vmul.f32 %v319, %v394
      %v432 = vmul.f32 %v320, %v399
      %v433 = vmul.f32 %v321, %v404
      %v434 = vmul.f32 %v322, %v409
      %v435 = vmul.f32 %v323, %v414
      %v436 = vmul.f32 %v324, %v419
      %437 = vst [vmem:[#allocation6] sm:$0xff] %v421
      %438 = vst [vmem:[#allocation6 + $0x8] sm:$0xff] %v422
      %439 = vst [vmem:[#allocation6 + $0x10] sm:$0xff] %v423
      %440 = vst [vmem:[#allocation6 + $0x18] sm:$0xff] %v424
      %441 = vst [vmem:[#allocation6 + $0x20] sm:$0xff] %v425
      %442 = vst [vmem:[#allocation6 + $0x28] sm:$0xff] %v426
      %443 = vst [vmem:[#allocation6 + $0x30] sm:$0xff] %v427
      %444 = vst [vmem:[#allocation6 + $0x38] sm:$0xff] %v428
      %445 = vst [vmem:[#allocation6 + $0x40] sm:$0xff] %v429
      %446 = vst [vmem:[#allocation6 + $0x48] sm:$0xff] %v430
      %447 = vst [vmem:[#allocation6 + $0x50] sm:$0xff] %v431
      %448 = vst [vmem:[#allocation6 + $0x58] sm:$0xff] %v432
      %449 = vst [vmem:[#allocation6 + $0x60] sm:$0xff] %v433
      %450 = vst [vmem:[#allocation6 + $0x68] sm:$0xff] %v434
      %451 = vst [vmem:[#allocation6 + $0x70] sm:$0xff] %v435
      %452 = vst [vmem:[#allocation6 + $0x78] sm:$0xff] %v436
    $region25: #{tpu_custom_call.1} parent=1 // pred_fallthru
      _
    // Predicated region
    $region26: #{tpu_custom_call.1} parent=1 // pred_check
      _
    $region27: #{tpu_custom_call.1} parent=1 // pred_check_branch
      %454 = sbr.rel (0) target = $region29
    $region28: #{tpu_custom_call.1} parent=1 // pred_region
      %s456 = ssub.s32 2048, 2048
      %457 = vsyncadd [#allocation5], %s456
      %s458 = sshll.u32 [#allocation6], 4
      %s459 = int_to_ptr.vmem [resolvable:$true] %s458
      %464 = dma.vmem_to_hbm [thread:$0]  %s459, 2048, %s3, [#allocation5], 128, 128, 8
    $region29: #{tpu_custom_call.1} parent=1 // pred_fallthru
      _
    // Predicated region
    $region30: #{tpu_custom_call.1} parent=1 // pred_check
      _
    $region31: #{tpu_custom_call.1} parent=1 // pred_check_branch
      %466 = sbr.rel (0) target = $region33
    $region32: #{tpu_custom_call.1} parent=1 // pred_region
      %467 = dma.done [#allocation5], 2048
    $region33: #{tpu_custom_call.1} parent=1 // pred_fallthru
      _
    %468 = vsyncpa [#allocation4], 1
    %469 = vsyncpa [#allocation5], 1

</llo_original>
